<compile_context>
chip_gen: v7x
topology: tpu7x:2x2x1
jax: 0.10.0
libtpu: 0.0.40
codegen_flags: <defaults>
</compile_context>

<pallas_src>
import math
import functools

import jax
import jax.numpy as jnp
from jax import lax
from jax.experimental import pallas as pl
from jax.experimental.pallas import tpu as pltpu


def _flash_kernel(q_ref, k_ref, v_ref, wo_ref, o_ref,
                  m_scr, l_scr, acc_scr, out_scr,
                  *, causal, tq, tk):
    qi = pl.program_id(1)
    h = pl.program_id(2)
    ki = pl.program_id(3)
    nheads = pl.num_programs(2)
    nkv = pl.num_programs(3)

    # ---- per-head init (kv == 0): reset online-softmax state.
    @pl.when(ki == 0)
    def _init():
        m_scr[...] = jnp.full_like(m_scr, -jnp.inf)
        l_scr[...] = jnp.zeros_like(l_scr)
        acc_scr[...] = jnp.zeros_like(acc_scr)

    # ---- one kv tile of online-softmax attention.
    def _attend_tile():
        q = q_ref[0, 0]                                               # (tq, Dqk)
        k = k_ref[0, 0]                                               # (tk, Dqk)
        v = v_ref[0, 0]                                               # (tk, Dv)

        # logits: contract the Dqk axis of q and k (both last) -> no transpose.
        s = lax.dot_general(q, k, (((1,), (1,)), ((), ())),
                            preferred_element_type=jnp.float32)       # (tq, tk)

        if causal:
            # kv tiles are visited in ascending order, so the first tile of
            # every q row always contains column 0 (unmasked) -> no NaN risk.
            row = qi * tq + lax.broadcasted_iota(jnp.int32, (tq, tk), 0)
            col = ki * tk + lax.broadcasted_iota(jnp.int32, (tq, tk), 1)
            s = jnp.where(row < col, -jnp.inf, s)

        m_prev = m_scr[...]
        m_new = jnp.maximum(m_prev, jnp.max(s, axis=-1, keepdims=True))
        alpha = jnp.exp(m_prev - m_new)
        p = jnp.exp(s - m_new)
        l_scr[...] = alpha * l_scr[...] + jnp.sum(p, axis=-1, keepdims=True)
        acc_scr[...] = alpha * acc_scr[...] + jnp.dot(
            p.astype(v.dtype), v, preferred_element_type=jnp.float32)
        m_scr[...] = m_new

    if causal:
        # Skip kv tiles strictly above the diagonal.
        pl.when(ki * tk < (qi + 1) * tq)(_attend_tile)
    else:
        _attend_tile()

    # ---- per-head finalize: normalize, project through this head's w_o slice,
    #      accumulate across heads in f32 scratch, store once at the last head.
    @pl.when(ki == nkv - 1)
    def _finalize():
        l = l_scr[...]
        inv_l = pl.reciprocal(l, approx=True)       # EUP estimate
        inv_l = inv_l * (2.0 - l * inv_l)           # one Newton step -> f32 accurate
        y_h = (acc_scr[...] * inv_l).astype(q_ref.dtype)              # (tq, Dv)
        contrib = jnp.dot(y_h, wo_ref[0],
                          preferred_element_type=jnp.float32)         # (tq, C_in)

        @pl.when(h == 0)
        def _():
            out_scr[...] = contrib

        @pl.when(h > 0)
        def _():
            out_scr[...] = out_scr[...] + contrib

        @pl.when(h == nheads - 1)
        def _():
            o_ref[0] = out_scr[...].astype(o_ref.dtype)


def _pick_tile(T):
    for t in (256, 128):
        if T % t == 0:
            return t
    return T  # short sequences: single full-sequence tile


def qkv_attention(x, w_q, w_k, w_v, w_o, *, causal=False):
    """x: (N, T, C);  w_q/w_k: (H, Dqk, C);  w_v: (H, Dv, C);  w_o: (H*Dv, C_in).
    Returns (N, T, C_in).  Full-sequence forward (bs_q.first == 0)."""
    N, T, C = x.shape
    H, Dqk, _ = w_q.shape
    Dv = w_v.shape[1]
    C_in = w_o.shape[1]
    scale = 1.0 / math.sqrt(Dqk)

    tq = tk = _pick_tile(T)
    nq, nkv = T // tq, T // tk

    # One-shot projections in XLA (linear in T); scale folded into w_q (weights).
    q = jnp.einsum('ntc,hdc->nhtd', x, w_q * scale).astype(x.dtype)   # (N,H,T,Dqk)
    k = jnp.einsum('ntc,hdc->nhtd', x, w_k).astype(x.dtype)           # (N,H,T,Dqk)
    v = jnp.einsum('ntc,hdc->nhtd', x, w_v).astype(x.dtype)           # (N,H,T,Dv)
    wo_r = w_o.reshape(H, Dv, C_in)                                   # (H,Dv,C_in)

    kernel = functools.partial(_flash_kernel, causal=causal, tq=tq, tk=tk)

    if causal:
        # Tiles above the diagonal are skipped in the kernel; clamp their block
        # index so the pipeline does not DMA dead K/V tiles (same index as the
        # previous step -> fetch elided).
        kv_map = lambda n, qi, h, ki: (n, h, jnp.minimum(ki, qi), 0)
    else:
        kv_map = lambda n, qi, h, ki: (n, h, ki, 0)

    return pl.pallas_call(
        kernel,
        out_shape=jax.ShapeDtypeStruct((N, T, C_in), x.dtype),
        grid_spec=pltpu.PrefetchScalarGridSpec(
            num_scalar_prefetch=0,
            grid=(N, nq, H, nkv),
            in_specs=[
                pl.BlockSpec((1, 1, tq, Dqk), lambda n, qi, h, ki: (n, h, qi, 0)),  # q
                pl.BlockSpec((1, 1, tk, Dqk), kv_map),                               # k
                pl.BlockSpec((1, 1, tk, Dv), kv_map),                                # v
                pl.BlockSpec((1, Dv, C_in), lambda n, qi, h, ki: (h, 0, 0)),         # w_o head slice
            ],
            out_specs=pl.BlockSpec((1, tq, C_in), lambda n, qi, h, ki: (n, qi, 0)),
            scratch_shapes=[
                pltpu.VMEM((tq, 1), jnp.float32),     # m (running max)
                pltpu.VMEM((tq, 1), jnp.float32),     # l (running denom)
                pltpu.VMEM((tq, Dv), jnp.float32),    # acc (running p @ v)
                pltpu.VMEM((tq, C_in), jnp.float32),  # output accumulator across heads
            ]),
        compiler_params=pltpu.CompilerParams(
            # h and kv axes MUST stay "arbitrary": scratch accumulation.
            dimension_semantics=("parallel", "parallel", "arbitrary", "arbitrary")),
    )(q, k, v, wo_r)


def qkv_attention_ref(x, w_q, w_k, w_v, w_o, *, causal=False):
    """Pure-JAX reference mirroring the PyTorch forward (first=0, full seq)."""
    N, T, _ = x.shape
    q = jnp.einsum('ntc,hdc->nhtd', x, w_q)
    k = jnp.einsum('ntc,hdc->nhtd', x, w_k)
    v = jnp.einsum('ntc,hdc->nhtd', x, w_v)
    a = jnp.einsum('nhtd,nhsd->nhts', q, k) / math.sqrt(w_q.shape[1])
    if causal:
        mask = jnp.arange(T)[:, None] < jnp.arange(T)[None, :]
        a = jnp.where(mask[None, None], -jnp.inf, a)
    a = jax.nn.softmax(a, axis=3)
    y = jnp.einsum('nhts,nhsd->nthd', a, v).reshape(N, T, -1)
    return y @ w_o


if __name__ == "__main__":
    def randw(key, *d):
        return jax.random.normal(key, d, dtype=jnp.float32) / math.sqrt(d[-1])

    configs = [
        # (N, T, dim_in, dim_qk, dim_v, heads, causal)  -- small module-like shapes
        (2, 8, 32, 16, 16, 2, True),
        (2, 8, 32, 16, 16, 2, False),
        # exercises multi-tile online softmax + causal tile skipping (tq=tk=128)
        (2, 256, 64, 32, 32, 2, True),
    ]

    ok = True
    for idx, (N, T, dim_in, dim_qk, dim_v, H, causal) in enumerate(configs):
        key = jax.random.PRNGKey(0)
        kx, kq, kk, kv, ko = jax.random.split(jax.random.fold_in(key, idx), 5)

        w_q = randw(kq, H, dim_qk, dim_in)
        w_k = randw(kk, H, dim_qk, dim_in)
        w_v = randw(kv, H, dim_v, dim_in)
        w_o = randw(ko, dim_v * H, dim_in)
        x = jax.random.normal(kx, (N, T, dim_in), dtype=jnp.float32)

        out = qkv_attention(x, w_q, w_k, w_v, w_o, causal=causal)
        out = jax.block_until_ready(out)

        ref = qkv_attention_ref(x, w_q, w_k, w_v, w_o, causal=causal)
        assert out.shape == (N, T, dim_in)
        err = float(jnp.max(jnp.abs(out - ref)))
        if not jnp.allclose(out, ref, atol=2e-4, rtol=2e-4):
            ok = False
            print(f"config {idx}: MISMATCH max abs err {err}")

    if ok:
        print("KERNEL_OK")
</pallas_src>

<mosaic_0001>
module attributes {stable_mosaic.version = 11 : i64} {
  func.func @_flash_kernel(%arg0: i32, %arg1: i32, %arg2: i32, %arg3: i32, %arg4: memref<1x1x8x16xf32, #tpu.memory_space<vmem>>, %arg5: memref<1x1x8x16xf32, #tpu.memory_space<vmem>>, %arg6: memref<1x1x8x16xf32, #tpu.memory_space<vmem>>, %arg7: memref<1x16x32xf32, #tpu.memory_space<vmem>>, %arg8: memref<1x8x32xf32, #tpu.memory_space<vmem>>, %arg9: memref<8x1xf32, #tpu.memory_space<vmem>>, %arg10: memref<8x1xf32, #tpu.memory_space<vmem>>, %arg11: memref<8x16xf32, #tpu.memory_space<vmem>>, %arg12: memref<8x32xf32, #tpu.memory_space<vmem>>) attributes {dimension_semantics = [#tpu.dimension_semantics<parallel>, #tpu.dimension_semantics<parallel>, #tpu.dimension_semantics<arbitrary>, #tpu.dimension_semantics<arbitrary>], iteration_bounds = array<i64: 2, 1, 2, 1>, scalar_prefetch = 0 : i64, scratch_operands = 4 : i64, tpu.core_type = #tpu.core_type<tc>, window_params = [{transform_indices = @transform_0, window_bounds = array<i64: 1, 1, 8, 16>}, {transform_indices = @transform_1, window_bounds = array<i64: 1, 1, 8, 16>}, {transform_indices = @transform_2, window_bounds = array<i64: 1, 1, 8, 16>}, {transform_indices = @transform_3, window_bounds = array<i64: 1, 16, 32>}, {transform_indices = @transform_4, window_bounds = array<i64: 1, 8, 32>}]} {
    %c0_i32 = arith.constant 0 : i32
    %0 = arith.cmpi eq, %arg3, %c0_i32 : i32
    %1 = arith.extui %0 : i1 to i32
    %c0_i32_0 = arith.constant 0 : i32
    %2 = arith.cmpi ne, %1, %c0_i32_0 : i32
    scf.if %2 {
      %cst = arith.constant 0xFF800000 : f32
      %12 = vector.broadcast %cst : f32 to vector<8x1xf32>
      %c0 = arith.constant 0 : index
      %c0_5 = arith.constant 0 : index
      %13 = vector.load %arg9[%c0, %c0_5] : memref<8x1xf32, #tpu.memory_space<vmem>>, vector<8x1xf32>
      tpu.vector_store %arg9[%c0, %c0_5], %12 {strides = array<i32>} : memref<8x1xf32, #tpu.memory_space<vmem>>, vector<8x1xf32>,
      %cst_6 = arith.constant 0.000000e+00 : f32
      %14 = vector.broadcast %cst_6 : f32 to vector<8x1xf32>
      %c0_7 = arith.constant 0 : index
      %c0_8 = arith.constant 0 : index
      %15 = vector.load %arg10[%c0_7, %c0_8] : memref<8x1xf32, #tpu.memory_space<vmem>>, vector<8x1xf32>
      tpu.vector_store %arg10[%c0_7, %c0_8], %14 {strides = array<i32>} : memref<8x1xf32, #tpu.memory_space<vmem>>, vector<8x1xf32>,
      %cst_9 = arith.constant 0.000000e+00 : f32
      %16 = vector.broadcast %cst_9 : f32 to vector<8x16xf32>
      %c0_10 = arith.constant 0 : index
      %c0_11 = arith.constant 0 : index
      %17 = vector.load %arg11[%c0_10, %c0_11] : memref<8x16xf32, #tpu.memory_space<vmem>>, vector<8x16xf32>
      tpu.vector_store %arg11[%c0_10, %c0_11], %16 {strides = array<i32>} : memref<8x16xf32, #tpu.memory_space<vmem>>, vector<8x16xf32>,
    } else {
    }
    %c8_i32 = arith.constant 8 : i32
    %3 = arith.muli %arg3, %c8_i32 : i32
    %c1_i32 = arith.constant 1 : i32
    %4 = arith.addi %arg1, %c1_i32 : i32
    %c8_i32_1 = arith.constant 8 : i32
    %5 = arith.muli %4, %c8_i32_1 : i32
    %6 = arith.cmpi slt, %3, %5 : i32
    %7 = arith.extui %6 : i1 to i32
    %c0_i32_2 = arith.constant 0 : i32
    %8 = arith.cmpi ne, %7, %c0_i32_2 : i32
    scf.if %8 {
      %c0 = arith.constant 0 : index
      %c0_5 = arith.constant 0 : index
      %c0_6 = arith.constant 0 : index
      %c0_7 = arith.constant 0 : index
      %12 = vector.load %arg4[%c0, %c0_5, %c0_6, %c0_7] : memref<1x1x8x16xf32, #tpu.memory_space<vmem>>, vector<1x1x8x16xf32>
      %13 = vector.shape_cast %12 : vector<1x1x8x16xf32> to vector<8x16xf32>
      %c0_8 = arith.constant 0 : index
      %c0_9 = arith.constant 0 : index
      %c0_10 = arith.constant 0 : index
      %c0_11 = arith.constant 0 : index
      %14 = vector.load %arg5[%c0_8, %c0_9, %c0_10, %c0_11] : memref<1x1x8x16xf32, #tpu.memory_space<vmem>>, vector<1x1x8x16xf32>
      %15 = vector.shape_cast %14 : vector<1x1x8x16xf32> to vector<8x16xf32>
      %c0_12 = arith.constant 0 : index
      %c0_13 = arith.constant 0 : index
      %c0_14 = arith.constant 0 : index
      %c0_15 = arith.constant 0 : index
      %16 = vector.load %arg6[%c0_12, %c0_13, %c0_14, %c0_15] : memref<1x1x8x16xf32, #tpu.memory_space<vmem>>, vector<1x1x8x16xf32>
      %17 = vector.shape_cast %16 : vector<1x1x8x16xf32> to vector<8x16xf32>
      %cst = arith.constant dense<0.000000e+00> : vector<8x8xf32>
      %18 = tpu.matmul %13, %15, %cst {dimension_numbers = #tpu.dot_dimension_numbers<[1], [1], [0], [0], [0, 0, 1, 0], [], []>} : vector<8x16xf32>, vector<8x16xf32>, vector<8x8xf32> -> vector<8x8xf32>
      %c8_i32_16 = arith.constant 8 : i32
      %19 = arith.muli %arg1, %c8_i32_16 : i32
      %20 = tpu.iota {dimensions = array<i32: 0>} : vector<8x8xi32>
      %21 = vector.broadcast %19 : i32 to vector<8x8xi32>
      %22 = arith.addi %21, %20 : vector<8x8xi32>
      %c8_i32_17 = arith.constant 8 : i32
      %23 = arith.muli %arg3, %c8_i32_17 : i32
      %24 = tpu.iota {dimensions = array<i32: 1>} : vector<8x8xi32>
      %25 = vector.broadcast %23 : i32 to vector<8x8xi32>
      %26 = arith.addi %25, %24 : vector<8x8xi32>
      %27 = arith.cmpi slt, %22, %26 : vector<8x8xi32>
      %cst_18 = arith.constant 0xFF800000 : f32
      %28 = vector.broadcast %cst_18 : f32 to vector<8x8xf32>
      %29 = arith.select %27, %28, %18 : vector<8x8xi1>, vector<8x8xf32>
      %c0_19 = arith.constant 0 : index
      %c0_20 = arith.constant 0 : index
      %30 = vector.load %arg9[%c0_19, %c0_20] : memref<8x1xf32, #tpu.memory_space<vmem>>, vector<8x1xf32>
      %cst_21 = arith.constant dense<0xFF800000> : vector<8xf32>
      %31 = vector.multi_reduction <maximumf>, %29, %cst_21 [1] : vector<8x8xf32> to vector<8xf32>
      %32 = vector.shape_cast %31 : vector<8xf32> to vector<8x1xf32>
      %33 = arith.maximumf %30, %32 : vector<8x1xf32>
      %34 = arith.subf %30, %33 : vector<8x1xf32>
      %35 = math.exp %34 : vector<8x1xf32>
      %36 = vector.broadcast %33 : vector<8x1xf32> to vector<8x8xf32>
      %37 = arith.subf %29, %36 : vector<8x8xf32>
      %38 = math.exp %37 : vector<8x8xf32>
      %c0_22 = arith.constant 0 : index
      %c0_23 = arith.constant 0 : index
      %39 = vector.load %arg10[%c0_22, %c0_23] : memref<8x1xf32, #tpu.memory_space<vmem>>, vector<8x1xf32>
      %40 = arith.mulf %35, %39 : vector<8x1xf32>
      %cst_24 = arith.constant dense<0.000000e+00> : vector<8xf32>
      %41 = vector.multi_reduction <add>, %38, %cst_24 [1] : vector<8x8xf32> to vector<8xf32>
      %42 = vector.shape_cast %41 : vector<8xf32> to vector<8x1xf32>
      %43 = arith.addf %40, %42 : vector<8x1xf32>
      %c0_25 = arith.constant 0 : index
      %c0_26 = arith.constant 0 : index
      %44 = vector.load %arg10[%c0_25, %c0_26] : memref<8x1xf32, #tpu.memory_space<vmem>>, vector<8x1xf32>
      tpu.vector_store %arg10[%c0_25, %c0_26], %43 {strides = array<i32>} : memref<8x1xf32, #tpu.memory_space<vmem>>, vector<8x1xf32>,
      %c0_27 = arith.constant 0 : index
      %c0_28 = arith.constant 0 : index
      %45 = vector.load %arg11[%c0_27, %c0_28] : memref<8x16xf32, #tpu.memory_space<vmem>>, vector<8x16xf32>
      %46 = vector.broadcast %35 : vector<8x1xf32> to vector<8x16xf32>
      %47 = arith.mulf %46, %45 : vector<8x16xf32>
      %cst_29 = arith.constant dense<0.000000e+00> : vector<8x16xf32>
      %48 = tpu.matmul %38, %17, %cst_29 {dimension_numbers = #tpu.dot_dimension_numbers<[1], [0], [0], [1], [0, 0, 1, 1], [], []>} : vector<8x8xf32>, vector<8x16xf32>, vector<8x16xf32> -> vector<8x16xf32>
      %49 = arith.addf %47, %48 : vector<8x16xf32>
      %c0_30 = arith.constant 0 : index
      %c0_31 = arith.constant 0 : index
      %50 = vector.load %arg11[%c0_30, %c0_31] : memref<8x16xf32, #tpu.memory_space<vmem>>, vector<8x16xf32>
      tpu.vector_store %arg11[%c0_30, %c0_31], %49 {strides = array<i32>} : memref<8x16xf32, #tpu.memory_space<vmem>>, vector<8x16xf32>,
      %c0_32 = arith.constant 0 : index
      %c0_33 = arith.constant 0 : index
      %51 = vector.load %arg9[%c0_32, %c0_33] : memref<8x1xf32, #tpu.memory_space<vmem>>, vector<8x1xf32>
      tpu.vector_store %arg9[%c0_32, %c0_33], %33 {strides = array<i32>} : memref<8x1xf32, #tpu.memory_space<vmem>>, vector<8x1xf32>,
    } else {
    }
    %c0_i32_3 = arith.constant 0 : i32
    %9 = arith.cmpi eq, %arg3, %c0_i32_3 : i32
    %10 = arith.extui %9 : i1 to i32
    %c0_i32_4 = arith.constant 0 : i32
    %11 = arith.cmpi ne, %10, %c0_i32_4 : i32
    scf.if %11 {
      %c0 = arith.constant 0 : index
      %c0_5 = arith.constant 0 : index
      %12 = vector.load %arg10[%c0, %c0_5] : memref<8x1xf32, #tpu.memory_space<vmem>>, vector<8x1xf32>
      %13 = tpu.reciprocal %12 {approx = true} : vector<8x1xf32> -> vector<8x1xf32>
      %14 = arith.mulf %12, %13 : vector<8x1xf32>
      %cst = arith.constant 2.000000e+00 : f32
      %15 = vector.broadcast %cst : f32 to vector<8x1xf32>
      %16 = arith.subf %15, %14 : vector<8x1xf32>
      %17 = arith.mulf %13, %16 : vector<8x1xf32>
      %c0_6 = arith.constant 0 : index
      %c0_7 = arith.constant 0 : index
      %18 = vector.load %arg11[%c0_6, %c0_7] : memref<8x16xf32, #tpu.memory_space<vmem>>, vector<8x16xf32>
      %19 = vector.broadcast %17 : vector<8x1xf32> to vector<8x16xf32>
      %20 = arith.mulf %18, %19 : vector<8x16xf32>
      %c0_8 = arith.constant 0 : index
      %c0_9 = arith.constant 0 : index
      %c0_10 = arith.constant 0 : index
      %21 = vector.load %arg7[%c0_8, %c0_9, %c0_10] : memref<1x16x32xf32, #tpu.memory_space<vmem>>, vector<1x16x32xf32>
      %22 = vector.shape_cast %21 : vector<1x16x32xf32> to vector<16x32xf32>
      %cst_11 = arith.constant dense<0.000000e+00> : vector<8x32xf32>
      %23 = tpu.matmul %20, %22, %cst_11 {dimension_numbers = #tpu.dot_dimension_numbers<[1], [0], [0], [1], [0, 0, 1, 1], [], []>} : vector<8x16xf32>, vector<16x32xf32>, vector<8x32xf32> -> vector<8x32xf32>
      %c0_i32_12 = arith.constant 0 : i32
      %24 = arith.cmpi eq, %arg2, %c0_i32_12 : i32
      %25 = arith.extui %24 : i1 to i32
      %c0_i32_13 = arith.constant 0 : i32
      %26 = arith.cmpi ne, %25, %c0_i32_13 : i32
      scf.if %26 {
        %c0_18 = arith.constant 0 : index
        %c0_19 = arith.constant 0 : index
        %33 = vector.load %arg12[%c0_18, %c0_19] : memref<8x32xf32, #tpu.memory_space<vmem>>, vector<8x32xf32>
        tpu.vector_store %arg12[%c0_18, %c0_19], %23 {strides = array<i32>} : memref<8x32xf32, #tpu.memory_space<vmem>>, vector<8x32xf32>,
      } else {
      }
      %c0_i32_14 = arith.constant 0 : i32
      %27 = arith.cmpi sgt, %arg2, %c0_i32_14 : i32
      %28 = arith.extui %27 : i1 to i32
      %c0_i32_15 = arith.constant 0 : i32
      %29 = arith.cmpi ne, %28, %c0_i32_15 : i32
      scf.if %29 {
        %c0_18 = arith.constant 0 : index
        %c0_19 = arith.constant 0 : index
        %33 = vector.load %arg12[%c0_18, %c0_19] : memref<8x32xf32, #tpu.memory_space<vmem>>, vector<8x32xf32>
        %34 = arith.addf %33, %23 : vector<8x32xf32>
        %c0_20 = arith.constant 0 : index
        %c0_21 = arith.constant 0 : index
        %35 = vector.load %arg12[%c0_20, %c0_21] : memref<8x32xf32, #tpu.memory_space<vmem>>, vector<8x32xf32>
        tpu.vector_store %arg12[%c0_20, %c0_21], %34 {strides = array<i32>} : memref<8x32xf32, #tpu.memory_space<vmem>>, vector<8x32xf32>,
      } else {
      }
      %c1_i32_16 = arith.constant 1 : i32
      %30 = arith.cmpi eq, %arg2, %c1_i32_16 : i32
      %31 = arith.extui %30 : i1 to i32
      %c0_i32_17 = arith.constant 0 : i32
      %32 = arith.cmpi ne, %31, %c0_i32_17 : i32
      scf.if %32 {
        %c0_18 = arith.constant 0 : index
        %c0_19 = arith.constant 0 : index
        %33 = vector.load %arg12[%c0_18, %c0_19] : memref<8x32xf32, #tpu.memory_space<vmem>>, vector<8x32xf32>
        %c0_20 = arith.constant 0 : index
        %c0_21 = arith.constant 0 : index
        %c0_22 = arith.constant 0 : index
        %34 = vector.load %arg8[%c0_20, %c0_21, %c0_22] : memref<1x8x32xf32, #tpu.memory_space<vmem>>, vector<1x8x32xf32>
        %35 = vector.shape_cast %34 : vector<1x8x32xf32> to vector<8x32xf32>
        %36 = vector.shape_cast %33 : vector<8x32xf32> to vector<1x8x32xf32>
        tpu.vector_store %arg8[%c0_20, %c0_21, %c0_22], %36 {strides = array<i32>} : memref<1x8x32xf32, #tpu.memory_space<vmem>>, vector<1x8x32xf32>,
      } else {
      }
    } else {
    }
    return
  }
  func.func @transform_0(%arg0: i32, %arg1: i32, %arg2: i32, %arg3: i32) -> (i32, i32, i32, i32) {
    %c0_i32 = arith.constant 0 : i32
    %c0_i32_0 = arith.constant 0 : i32
    return %arg0, %arg2, %arg1, %c0_i32 : i32, i32, i32, i32
  }
  func.func @transform_1(%arg0: i32, %arg1: i32, %arg2: i32, %arg3: i32) -> (i32, i32, i32, i32) {
    %0 = arith.minsi %arg3, %arg1 : i32
    %c0_i32 = arith.constant 0 : i32
    %c0_i32_0 = arith.constant 0 : i32
    return %arg0, %arg2, %0, %c0_i32 : i32, i32, i32, i32
  }
  func.func @transform_2(%arg0: i32, %arg1: i32, %arg2: i32, %arg3: i32) -> (i32, i32, i32, i32) {
    %0 = arith.minsi %arg3, %arg1 : i32
    %c0_i32 = arith.constant 0 : i32
    %c0_i32_0 = arith.constant 0 : i32
    return %arg0, %arg2, %0, %c0_i32 : i32, i32, i32, i32
  }
  func.func @transform_3(%arg0: i32, %arg1: i32, %arg2: i32, %arg3: i32) -> (i32, i32, i32) {
    %c0_i32 = arith.constant 0 : i32
    %c0_i32_0 = arith.constant 0 : i32
    %c0_i32_1 = arith.constant 0 : i32
    return %arg2, %c0_i32, %c0_i32_0 : i32, i32, i32
  }
  func.func @transform_4(%arg0: i32, %arg1: i32, %arg2: i32, %arg3: i32) -> (i32, i32, i32) {
    %c0_i32 = arith.constant 0 : i32
    %c0_i32_0 = arith.constant 0 : i32
    return %arg0, %arg1, %c0_i32 : i32, i32, i32
  }
}

</mosaic_0001>

<llo_original>
// kernel: tpu_custom_call.1
$region0: #{tpu_custom_call.1}
  #allocation0 [shape = 'u32[]', space=smem, size = 0x4, offset = 0x4, fixed_abs, tag = 'smem constant byte address 0x4 - core index']
  #allocation1 [shape = 'u32[144,128]{1,0:T(1,128)}', space=vmem, size = 0x12000, scoped, tag = 'internal scratch']
  #allocation2 [shape = 'f32[8,1]{1,0:T(8,128)}', space=vmem, size = 0x1000, scoped, tag = 'scratch operand']
  #allocation3 [shape = 'f32[8,1]{1,0:T(8,128)}', space=vmem, size = 0x1000, scoped, tag = 'scratch operand']
  #allocation4 [shape = 'f32[8,16]{1,0:T(8,128)}', space=vmem, size = 0x1000, scoped, tag = 'scratch operand']
  #allocation5 [shape = 'f32[8,32]{1,0:T(8,128)}', space=vmem, size = 0x1000, scoped, tag = 'scratch operand']
  %s0 = inlined_call_operand.hbm [shape: f32[2,2,8,16], index: 0, kind: input, shape index: {}]
  %s1 = inlined_call_operand.hbm [shape: f32[2,2,8,16], index: 1, kind: input, shape index: {}]
  %s2 = inlined_call_operand.hbm [shape: f32[2,2,8,16], index: 2, kind: input, shape index: {}]
  %s3 = inlined_call_operand.hbm [shape: f32[2,16,32], index: 3, kind: input, shape index: {}]
  %s4 = inlined_call_operand.hbm [shape: f32[2,8,32], index: 4, kind: output, shape index: {}]
  %s5 = sld [smem:[#allocation0]]
  $region89: #{tpu_custom_call.1} parent=0
    _
  %s7 = ssub.s32 1, %s5
  %s8 = scalar_select 0, %s7, %s5
  $region1: #{tpu_custom_call.1} parent=0
    #allocation6 [shape = 'u8[8192]{0}', space=vmem, size = 0x2000, scoped, tag = 'input window, operand 0']
    #allocation7 [shape = 's32[2]{0}', space=sflag, size = 0x8, scoped, tag = 'scoped memory for tpu_custom_call.1']
    #allocation8 [shape = 's32[2]{0}', space=sflag, size = 0x8, scoped, tag = 'scoped memory for tpu_custom_call.1']
    #allocation9 [shape = 'u8[8192]{0}', space=vmem, size = 0x2000, scoped, tag = 'input window, operand 1']
    #allocation10 [shape = 's32[2]{0}', space=sflag, size = 0x8, scoped, tag = 'scoped memory for tpu_custom_call.1']
    #allocation11 [shape = 'u8[8192]{0}', space=vmem, size = 0x2000, scoped, tag = 'input window, operand 2']
    #allocation12 [shape = 'u8[16384]{0}', space=vmem, size = 0x4000, scoped, tag = 'input window, operand 3']
    #allocation13 [shape = 's32[2]{0}', space=sflag, size = 0x8, scoped, tag = 'scoped memory for tpu_custom_call.1']
    #allocation14 [shape = 'u8[8192]{0}', space=vmem, size = 0x2000, scoped, tag = 'output window, operand 0']
    %9 = vsyncpa [#allocation7], 0
    %s10 = scalar_lea.sflag [#allocation7], 1
    %11 = vsyncpa %s10, 0
    %12 = vsyncpa [#allocation10], 0
    %s13 = scalar_lea.sflag [#allocation10], 1
    %14 = vsyncpa %s13, 0
    %15 = vsyncpa [#allocation13], 0
    %s16 = scalar_lea.sflag [#allocation13], 1
    %17 = vsyncpa %s16, 0
    %18 = vsyncpa [#allocation8], 0
    %s19 = scalar_lea.sflag [#allocation8], 1
    %20 = vsyncpa %s19, 0
    loop: start=0, step=1, limit=6
    $region2: #{tpu_custom_call.1} parent=1 // loop_pre_header
      _
    $region3: #{tpu_custom_call.1} parent=1 // loop_header
      %s22 = sphi 0, %s26
      %p23 = scmp.ge.s32.totalorder %s22, 6
      %s29 = sphi 0, %s55
      %s30 = sphi 0, %s51
      %s31 = sphi 0, %s47
      %s32 = sphi 0, %s43
      %s33 = sphi 0, %s29
      %s34 = sphi 0, %s30
      %s35 = sphi 0, %s31
      %s36 = sphi 0, %s32
      %s37 = sphi 0, %s33
      %s38 = sphi 0, %s34
      %s39 = sphi 0, %s35
      %s40 = sphi 0, %s36
      %s62 = sphi 0, %s64
      %s65 = sphi 0, %s62
      %s66 = sphi 0, %s65
      %s82 = sphi 0, %s66
      %s96 = sphi 0, %s98
      %s99 = sphi 0, %s96
      %s100 = sphi 0, %s99
      %s116 = sphi 0, %s100
      %s130 = sphi 0, %s132
      %s133 = sphi 0, %s130
      %s134 = sphi 0, %s133
      %s150 = sphi 0, %s134
      %s156 = sphi 0, %s158
      %s159 = sphi 0, %s156
      %s160 = sphi 0, %s159
      %s176 = sphi 0, %s160
      %s184 = sphi 0, %s186
      %s187 = sphi 0, %s184
      %s188 = sphi 0, %s187
      %s204 = sphi 0, %s188
    $region4: #{tpu_custom_call.1} parent=1 // loop_header_branch
      %25 = sbr.rel (%p23) target = $region8
    $region5: #{tpu_custom_call.1} parent=1 // loop_body
      %s27 = ssub.s32 %s22, 1
      %s28 = ssub.s32 %s22, 2
      %s41 = sadd.s32 1, %s32
      %p42 = scmp.ge.s32.totalorder %s41, 1
      %s43 = scalar_select %p42, 0, %s41
      %s44 = sadd.s32 1, %s31
      %s45 = scalar_select %p42, %s44, %s31
      %p46 = scmp.ge.s32.totalorder %s45, 2
      %s47 = scalar_select %p46, 0, %s45
      %s48 = sadd.s32 1, %s30
      %s49 = scalar_select %p46, %s48, %s30
      %p50 = scmp.ge.s32.totalorder %s49, 1
      %s51 = scalar_select %p50, 0, %s49
      %s52 = sadd.s32 1, %s29
      %s53 = scalar_select %p50, %s52, %s29
      %p54 = scmp.ge.s32.totalorder %s53, 2
      %s55 = scalar_select %p54, 0, %s53
      %s56 = ssub.s32 %s29, %s55
      %s57 = ssub.s32 %s31, %s47
      %s58 = sor.u32 %s56, %s57
      %s59 = ssub.s32 %s30, %s51
      %s60 = sor.u32 %s58, %s59
      %p61 = scmp.eq.s32.totalorder %s60, 0
      %s63 = sadd.s32 %s62, 1
      %s64 = scalar_select %p61, %s62, %s63
      %p67 = pneg %p61
      %p68 = scmp.eq.s32.totalorder %s22, 3
      %p69 = por %p67, %p68
      %p70 = scmp.ne.s32.totalorder %s62, %s65
      %p71 = scmp.eq.s32.totalorder %s22, 0
      %p72 = por %p70, %p71
      %p73 = scmp.ne.s32.totalorder %s62, %s65
      %p74 = scmp.eq.s32.totalorder %s27, 3
      %p75 = por %p73, %p74
      %p76 = scmp.ne.s32.totalorder %s65, %s66
      %p77 = scmp.eq.s32.totalorder %s27, 0
      %p78 = por %p76, %p77
      %p79 = scmp.ne.s32.totalorder %s65, %s66
      %p80 = scmp.eq.s32.totalorder %s28, 3
      %p81 = por %p79, %p80
      %p83 = scmp.ne.s32.totalorder %s66, %s82
      %p84 = scmp.eq.s32.totalorder %s28, 0
      %p85 = por %p83, %p84
      %p86 = scmp.lt.s32.totalorder %s32, %s30
      %s87 = scalar_select %p86, %s32, %s30
      %p88 = scmp.lt.s32.totalorder %s43, %s51
      %s89 = scalar_select %p88, %s43, %s51
      %s90 = ssub.s32 %s29, %s55
      %s91 = ssub.s32 %s31, %s47
      %s92 = sor.u32 %s90, %s91
      %s93 = ssub.s32 %s87, %s89
      %s94 = sor.u32 %s92, %s93
      %p95 = scmp.eq.s32.totalorder %s94, 0
      %s97 = sadd.s32 %s96, 1
      %s98 = scalar_select %p95, %s96, %s97
      %p101 = pneg %p95
      %p102 = scmp.eq.s32.totalorder %s22, 3
      %p103 = por %p101, %p102
      %p104 = scmp.ne.s32.totalorder %s96, %s99
      %p105 = scmp.eq.s32.totalorder %s22, 0
      %p106 = por %p104, %p105
      %p107 = scmp.ne.s32.totalorder %s96, %s99
      %p108 = scmp.eq.s32.totalorder %s27, 3
      %p109 = por %p107, %p108
      %p110 = scmp.ne.s32.totalorder %s99, %s100
      %p111 = scmp.eq.s32.totalorder %s27, 0
      %p112 = por %p110, %p111
      %p113 = scmp.ne.s32.totalorder %s99, %s100
      %p114 = scmp.eq.s32.totalorder %s28, 3
      %p115 = por %p113, %p114
      %p117 = scmp.ne.s32.totalorder %s100, %s116
      %p118 = scmp.eq.s32.totalorder %s28, 0
      %p119 = por %p117, %p118
      %p120 = scmp.lt.s32.totalorder %s32, %s30
      %s121 = scalar_select %p120, %s32, %s30
      %p122 = scmp.lt.s32.totalorder %s43, %s51
      %s123 = scalar_select %p122, %s43, %s51
      %s124 = ssub.s32 %s29, %s55
      %s125 = ssub.s32 %s31, %s47
      %s126 = sor.u32 %s124, %s125
      %s127 = ssub.s32 %s121, %s123
      %s128 = sor.u32 %s126, %s127
      %p129 = scmp.eq.s32.totalorder %s128, 0
      %s131 = sadd.s32 %s130, 1
      %s132 = scalar_select %p129, %s130, %s131
      %p135 = pneg %p129
      %p136 = scmp.eq.s32.totalorder %s22, 3
      %p137 = por %p135, %p136
      %p138 = scmp.ne.s32.totalorder %s130, %s133
      %p139 = scmp.eq.s32.totalorder %s22, 0
      %p140 = por %p138, %p139
      %p141 = scmp.ne.s32.totalorder %s130, %s133
      %p142 = scmp.eq.s32.totalorder %s27, 3
      %p143 = por %p141, %p142
      %p144 = scmp.ne.s32.totalorder %s133, %s134
      %p145 = scmp.eq.s32.totalorder %s27, 0
      %p146 = por %p144, %p145
      %p147 = scmp.ne.s32.totalorder %s133, %s134
      %p148 = scmp.eq.s32.totalorder %s28, 3
      %p149 = por %p147, %p148
      %p151 = scmp.ne.s32.totalorder %s134, %s150
      %p152 = scmp.eq.s32.totalorder %s28, 0
      %p153 = por %p151, %p152
      %s154 = ssub.s32 %s31, %s47
      %p155 = scmp.eq.s32.totalorder %s154, 0
      %s157 = sadd.s32 %s156, 1
      %s158 = scalar_select %p155, %s156, %s157
      %p161 = pneg %p155
      %p162 = scmp.eq.s32.totalorder %s22, 3
      %p163 = por %p161, %p162
      %p164 = scmp.ne.s32.totalorder %s156, %s159
      %p165 = scmp.eq.s32.totalorder %s22, 0
      %p166 = por %p164, %p165
      %p167 = scmp.ne.s32.totalorder %s156, %s159
      %p168 = scmp.eq.s32.totalorder %s27, 3
      %p169 = por %p167, %p168
      %p170 = scmp.ne.s32.totalorder %s159, %s160
      %p171 = scmp.eq.s32.totalorder %s27, 0
      %p172 = por %p170, %p171
      %p173 = scmp.ne.s32.totalorder %s159, %s160
      %p174 = scmp.eq.s32.totalorder %s28, 3
      %p175 = por %p173, %p174
      %p177 = scmp.ne.s32.totalorder %s160, %s176
      %p178 = scmp.eq.s32.totalorder %s28, 0
      %p179 = por %p177, %p178
      %s180 = ssub.s32 %s29, %s55
      %s181 = ssub.s32 %s30, %s51
      %s182 = sor.u32 %s180, %s181
      %p183 = scmp.eq.s32.totalorder %s182, 0
      %s185 = sadd.s32 %s184, 1
      %s186 = scalar_select %p183, %s184, %s185
      %p189 = pneg %p183
      %p190 = scmp.eq.s32.totalorder %s22, 3
      %p191 = por %p189, %p190
      %p192 = scmp.ne.s32.totalorder %s184, %s187
      %p193 = scmp.eq.s32.totalorder %s22, 0
      %p194 = por %p192, %p193
      %p195 = scmp.ne.s32.totalorder %s184, %s187
      %p196 = scmp.eq.s32.totalorder %s27, 3
      %p197 = por %p195, %p196
      %p198 = scmp.ne.s32.totalorder %s187, %s188
      %p199 = scmp.eq.s32.totalorder %s27, 0
      %p200 = por %p198, %p199
      %p201 = scmp.ne.s32.totalorder %s187, %s188
      %p202 = scmp.eq.s32.totalorder %s28, 3
      %p203 = por %p201, %p202
      %p205 = scmp.ne.s32.totalorder %s188, %s204
      %p206 = scmp.eq.s32.totalorder %s28, 0
      %p207 = por %p205, %p206
      %p208 = scmp.le.s32.totalorder 1, %s22
      %p209 = scmp.lt.s32.totalorder %s22, 5
      %p210 = pnand %p208, %p209
      %p211 = pneg %p210
      // Predicated region
      $region9: #{tpu_custom_call.1} parent=5 // pred_check
        _
      $region10: #{tpu_custom_call.1} parent=5 // pred_check_branch
        %213 = sbr.rel (%p210) target = $region12
      $region11: #{tpu_custom_call.1} parent=5 // pred_region
        %s214 = ssub.s32 %s22, 1
      $region12: #{tpu_custom_call.1} parent=5 // pred_fallthru
        _
      %p215 = scmp.lt.s32.totalorder %s22, 4
      // Predicated region
      $region13: #{tpu_custom_call.1} parent=5 // pred_check
        %p216 = pneg %p215
      $region14: #{tpu_custom_call.1} parent=5 // pred_check_branch
        %218 = sbr.rel (%p216) target = $region16
      $region15: #{tpu_custom_call.1} parent=5 // pred_region
        // Predicated region
        $region17: #{tpu_custom_call.1} parent=15 // pred_check
          %p219 = pneg %p72
        $region18: #{tpu_custom_call.1} parent=15 // pred_check_branch
          %221 = sbr.rel (%p219) target = $region20
        $region19: #{tpu_custom_call.1} parent=15 // pred_region
          %s222 = sand.u32 %s62, 1
          %s223 = scalar_lea.sflag [#allocation7], %s222
          %s224 = sand.u32 %s62, 1
          %s225 = smul.addr %s224, 8
          %s226 = scalar_lea.vmem [#allocation6], %s225
          %s228 = ssub.s32 128, 128
          %229 = vsyncadd %s223, %s228
          %s230 = sadd.s32 %s30, %s31
          %s231 = smul.addr %s29, 2
          %s232 = sadd.s32 %s230, %s231
          %s233 = smul.addr %s232, 128
          %s234 = scalar_lea.hbm %s0, %s233
          %s236 = sshll.u32 %s226, 4
          %s237 = int_to_ptr.vmem [resolvable:$true] %s236
          %239 = dma.hbm_to_vmem [thread:$0]  %s234, 128, %s237, %s223
        $region20: #{tpu_custom_call.1} parent=15 // pred_fallthru
          _
        // Predicated region
        $region21: #{tpu_custom_call.1} parent=15 // pred_check
          %p240 = pneg %p106
        $region22: #{tpu_custom_call.1} parent=15 // pred_check_branch
          %242 = sbr.rel (%p240) target = $region24
        $region23: #{tpu_custom_call.1} parent=15 // pred_region
          %s243 = sand.u32 %s22, 1
          %s244 = scalar_lea.sflag [#allocation10], %s243
          %s245 = sand.u32 %s96, 1
          %s246 = smul.addr %s245, 8
          %s247 = scalar_lea.vmem [#allocation9], %s246
          %p248 = scmp.lt.s32.totalorder %s32, %s30
          %s249 = scalar_select %p248, %s32, %s30
          %s251 = ssub.s32 128, 128
          %252 = vsyncadd %s244, %s251
          %s253 = sadd.s32 %s249, %s31
          %s254 = smul.addr %s29, 2
          %s255 = sadd.s32 %s253, %s254
          %s256 = smul.addr %s255, 128
          %s257 = scalar_lea.hbm %s1, %s256
          %s259 = sshll.u32 %s247, 4
          %s260 = int_to_ptr.vmem [resolvable:$true] %s259
          %262 = dma.hbm_to_vmem [thread:$0]  %s257, 128, %s260, %s244
        $region24: #{tpu_custom_call.1} parent=15 // pred_fallthru
          _
        // Predicated region
        $region25: #{tpu_custom_call.1} parent=15 // pred_check
          %p263 = pneg %p140
        $region26: #{tpu_custom_call.1} parent=15 // pred_check_branch
          %265 = sbr.rel (%p263) target = $region28
        $region27: #{tpu_custom_call.1} parent=15 // pred_region
          %s266 = sand.u32 %s22, 1
          %s267 = scalar_lea.sflag [#allocation10], %s266
          %s268 = sand.u32 %s130, 1
          %s269 = smul.addr %s268, 8
          %s270 = scalar_lea.vmem [#allocation11], %s269
          %p271 = scmp.lt.s32.totalorder %s32, %s30
          %s272 = scalar_select %p271, %s32, %s30
          %s274 = ssub.s32 128, 128
          %275 = vsyncadd %s267, %s274
          %s276 = sadd.s32 %s272, %s31
          %s277 = smul.addr %s29, 2
          %s278 = sadd.s32 %s276, %s277
          %s279 = smul.addr %s278, 128
          %s280 = scalar_lea.hbm %s2, %s279
          %s282 = sshll.u32 %s270, 4
          %s283 = int_to_ptr.vmem [resolvable:$true] %s282
          %285 = dma.hbm_to_vmem [thread:$0]  %s280, 128, %s283, %s267
        $region28: #{tpu_custom_call.1} parent=15 // pred_fallthru
          _
        // Predicated region
        $region29: #{tpu_custom_call.1} parent=15 // pred_check
          %p286 = pneg %p166
        $region30: #{tpu_custom_call.1} parent=15 // pred_check_branch
          %288 = sbr.rel (%p286) target = $region32
        $region31: #{tpu_custom_call.1} parent=15 // pred_region
          %s289 = sand.u32 %s156, 1
          %s290 = scalar_lea.sflag [#allocation13], %s289
          %s291 = sand.u32 %s156, 1
          %s292 = smul.addr %s291, 16
          %s293 = scalar_lea.vmem [#allocation12], %s292
          %s295 = ssub.s32 256, 256
          %296 = vsyncadd %s290, %s295
          %s297 = smul.addr %s31, 2
          %s298 = smul.addr %s297, 128
          %s299 = scalar_lea.hbm %s3, %s298
          %s300 = sshll.u32 %s293, 4
          %s301 = int_to_ptr.vmem [resolvable:$true] %s300
          %306 = dma.hbm_to_vmem [thread:$0]  %s299, 256, %s301, %s290, 128, 128, 8
        $region32: #{tpu_custom_call.1} parent=15 // pred_fallthru
          _
      $region16: #{tpu_custom_call.1} parent=5 // pred_fallthru
        _
      %p307 = scmp.le.s32.totalorder 1, %s22
      %p308 = scmp.lt.s32.totalorder %s22, 5
      %p309 = pnand %p307, %p308
      %p310 = pneg %p309
      // Predicated region
      $region33: #{tpu_custom_call.1} parent=5 // pred_check
        _
      $region34: #{tpu_custom_call.1} parent=5 // pred_check_branch
        %312 = sbr.rel (%p309) target = $region36
      $region35: #{tpu_custom_call.1} parent=5 // pred_region
        %s313 = ssub.s32 %s22, 1
        %s314 = sand.u32 %s65, 1
        %s315 = scalar_lea.sflag [#allocation7], %s314
        %s316 = sand.u32 %s65, 1
        %s317 = smul.addr %s316, 8
        %s318 = scalar_lea.vmem [#allocation6], %s317
        // Predicated region
        $region37: #{tpu_custom_call.1} parent=35 // pred_check
          %p319 = pneg %p78
        $region38: #{tpu_custom_call.1} parent=35 // pred_check_branch
          %321 = sbr.rel (%p319) target = $region40
        $region39: #{tpu_custom_call.1} parent=35 // pred_region
          %322 = dma.done %s315, 128
        $region40: #{tpu_custom_call.1} parent=35 // pred_fallthru
          _
        %s323 = sand.u32 %s27, 1
        %s324 = scalar_lea.sflag [#allocation10], %s323
        %s325 = sand.u32 %s99, 1
        %s326 = smul.addr %s325, 8
        %s327 = scalar_lea.vmem [#allocation9], %s326
        // Predicated region
        $region41: #{tpu_custom_call.1} parent=35 // pred_check
          %p328 = pneg %p112
        $region42: #{tpu_custom_call.1} parent=35 // pred_check_branch
          %330 = sbr.rel (%p328) target = $region44
        $region43: #{tpu_custom_call.1} parent=35 // pred_region
          %331 = dma.done %s324, 128
        $region44: #{tpu_custom_call.1} parent=35 // pred_fallthru
          _
        %s332 = sand.u32 %s27, 1
        %s333 = scalar_lea.sflag [#allocation10], %s332
        %s334 = sand.u32 %s133, 1
        %s335 = smul.addr %s334, 8
        %s336 = scalar_lea.vmem [#allocation11], %s335
        // Predicated region
        $region45: #{tpu_custom_call.1} parent=35 // pred_check
          %p337 = pneg %p146
        $region46: #{tpu_custom_call.1} parent=35 // pred_check_branch
          %339 = sbr.rel (%p337) target = $region48
        $region47: #{tpu_custom_call.1} parent=35 // pred_region
          %340 = dma.done %s333, 128
        $region48: #{tpu_custom_call.1} parent=35 // pred_fallthru
          _
        %s341 = sand.u32 %s159, 1
        %s342 = scalar_lea.sflag [#allocation13], %s341
        %s343 = sand.u32 %s159, 1
        %s344 = smul.addr %s343, 16
        %s345 = scalar_lea.vmem [#allocation12], %s344
        // Predicated region
        $region49: #{tpu_custom_call.1} parent=35 // pred_check
          %p346 = pneg %p172
        $region50: #{tpu_custom_call.1} parent=35 // pred_check_branch
          %348 = sbr.rel (%p346) target = $region52
        $region51: #{tpu_custom_call.1} parent=35 // pred_region
          %349 = dma.done %s342, 256
        $region52: #{tpu_custom_call.1} parent=35 // pred_fallthru
          _
        %s350 = sand.u32 %s65, 1
        %s351 = scalar_lea.sflag [#allocation7], %s350
        %s352 = sand.u32 %s65, 1
        %s353 = smul.addr %s352, 8
        %s354 = scalar_lea.vmem [#allocation6], %s353
        %p355 = pneg %p78
        %p356 = pneg %p75
        %s357 = sand.u32 %s27, 1
        %s358 = scalar_lea.sflag [#allocation10], %s357
        %s359 = sand.u32 %s99, 1
        %s360 = smul.addr %s359, 8
        %s361 = scalar_lea.vmem [#allocation9], %s360
        %p362 = pneg %p112
        %p363 = pneg %p109
        %s364 = sand.u32 %s27, 1
        %s365 = scalar_lea.sflag [#allocation10], %s364
        %s366 = sand.u32 %s133, 1
        %s367 = smul.addr %s366, 8
        %s368 = scalar_lea.vmem [#allocation11], %s367
        %p369 = pneg %p146
        %p370 = pneg %p143
        %s371 = sand.u32 %s159, 1
        %s372 = scalar_lea.sflag [#allocation13], %s371
        %s373 = sand.u32 %s159, 1
        %s374 = smul.addr %s373, 16
        %s375 = scalar_lea.vmem [#allocation12], %s374
        %p376 = pneg %p172
        %p377 = pneg %p169
        %p378 = pneg %p200
        %p379 = pneg %p197
        %s380 = sand.u32 %s187, 1
        %s381 = scalar_lea.sflag [#allocation8], %s380
        %s382 = sand.u32 %s187, 1
        %s383 = smul.addr %s382, 8
        %s384 = scalar_lea.vmem [#allocation14], %s383
        %p385 = scmp.lt.s32.totalorder %s36, %s34
        %s386 = scalar_select %p385, %s36, %s34
        %p387 = scmp.lt.s32.totalorder %s36, %s34
        %s388 = scalar_select %p387, %s36, %s34
        %p389 = scmp.eq.s32.totalorder %s36, 0
        // Predicated region
        $region53: #{tpu_custom_call.1} parent=35 // pred_check
          %p390 = pneg %p389
        $region54: #{tpu_custom_call.1} parent=35 // pred_check_branch
          %392 = sbr.rel (%p390) target = $region56
        $region55: #{tpu_custom_call.1} parent=35 // pred_region
          %vm393 = vcmask 7168
          %394 = vst.msk [vmem:[#allocation2] sm:$0xff] %vm393, -inf
          %395 = vst.msk [vmem:[#allocation3] sm:$0xff] %vm393, 0.0
          %vm396 = vcmask 130048
          %397 = vst.msk [vmem:[#allocation4] sm:$0xff] %vm396, 0.0
        $region56: #{tpu_custom_call.1} parent=35 // pred_fallthru
          _
        %s398 = smul.u32 %s36, 8
        %s399 = sadd.s32 %s34, 1
        %s400 = smul.u32 %s399, 8
        %p401 = scmp.lt.s32.totalorder %s398, %s400
        // Predicated region
        $region57: #{tpu_custom_call.1} parent=35 // pred_check
          %p402 = pneg %p401
        $region58: #{tpu_custom_call.1} parent=35 // pred_check_branch
          %404 = sbr.rel (%p402) target = $region60
        $region59: #{tpu_custom_call.1} parent=35 // pred_region
          %v405 = vld [vmem:[%s318] sm:$0xff]
          %v406 = vld [vmem:[%s327] sm:$0xff]
          %v407 = vld [vmem:[%s336] sm:$0xff]
          %vm408 = vcmask 130048
          %v410 = vsel %vm408, %v405, 0
          %v413 = vsel %vm408, %v406, 0
          %415 = vmatprep.subr.mxu0 0.0
          %416 = vmatpush1.xpose.msra.mxu0 %v413
          %417 = vmatprep.subr.mxu0 0.0
          %418 = vmatpush1.xpose.msra.mxu0 0.0
          %419 = vmatprep.subr.mxu0 0.0
          %420 = vmatpush1.xpose.msra.mxu0 0.0
          %421 = vmatprep.subr.mxu0 0.0
          %422 = vmatpush1.xpose.msra.mxu0 0.0
          %423 = vmatprep.subr.mxu0 0.0
          %424 = vmatpush1.xpose.msra.mxu0 0.0
          %425 = vmatprep.subr.mxu0 0.0
          %426 = vmatpush1.xpose.msra.mxu0 0.0
          %427 = vmatprep.subr.mxu0 0.0
          %428 = vmatpush1.xpose.msra.mxu0 0.0
          %429 = vmatprep.subr.mxu0 0.0
          %430 = vmatpush1.xpose.msra.mxu0 0.0
          %431 = vmatprep.subr.mxu0 0.0
          %432 = vmatpush1.xpose.msra.mxu0 0.0
          %433 = vmatprep.subr.mxu0 0.0
          %434 = vmatpush1.xpose.msra.mxu0 0.0
          %435 = vmatprep.subr.mxu0 0.0
          %436 = vmatpush1.xpose.msra.mxu0 0.0
          %437 = vmatprep.subr.mxu0 0.0
          %438 = vmatpush1.xpose.msra.mxu0 0.0
          %439 = vmatprep.subr.mxu0 0.0
          %440 = vmatpush1.xpose.msra.mxu0 0.0
          %441 = vmatprep.subr.mxu0 0.0
          %442 = vmatpush1.xpose.msra.mxu0 0.0
          %443 = vmatprep.subr.mxu0 0.0
          %444 = vmatpush1.xpose.msra.mxu0 0.0
          %445 = vmatprep.subr.mxu0 0.0
          %446 = vmatpush1.xpose.msra.mxu0 0.0
          %447 = vmatprep.subr.mxu0 0.0
          %448 = vmatpush1.xpose.msra.mxu0 0.0
          %449 = vmatprep.subr.mxu0 0.0
          %450 = vmatpush1.xpose.msra.mxu0 0.0
          %451 = vmatprep.subr.mxu0 0.0
          %452 = vmatpush1.xpose.msra.mxu0 0.0
          %453 = vmatprep.subr.mxu0 0.0
          %454 = vmatpush1.xpose.msra.mxu0 0.0
          %455 = vmatprep.subr.mxu0 0.0
          %456 = vmatpush1.xpose.msra.mxu0 0.0
          %457 = vmatprep.subr.mxu0 0.0
          %458 = vmatpush1.xpose.msra.mxu0 0.0
          %459 = vmatprep.subr.mxu0 0.0
          %460 = vmatpush1.xpose.msra.mxu0 0.0
          %461 = vmatprep.subr.mxu0 0.0
          %462 = vmatpush1.xpose.msra.mxu0 0.0
          %463 = vmatprep.subr.mxu0 0.0
          %464 = vmatpush1.xpose.msra.mxu0 0.0
          %465 = vmatprep.subr.mxu0 0.0
          %466 = vmatpush1.xpose.msra.mxu0 0.0
          %467 = vmatprep.subr.mxu0 0.0
          %468 = vmatpush1.xpose.msra.mxu0 0.0
          %469 = vmatprep.subr.mxu0 0.0
          %470 = vmatpush1.xpose.msra.mxu0 0.0
          %471 = vmatprep.subr.mxu0 0.0
          %472 = vmatpush1.xpose.msra.mxu0 0.0
          %473 = vmatprep.subr.mxu0 0.0
          %474 = vmatpush1.xpose.msra.mxu0 0.0
          %475 = vmatprep.subr.mxu0 0.0
          %476 = vmatpush1.xpose.msra.mxu0 0.0
          %477 = vmatprep.subr.mxu0 0.0
          %478 = vmatpush1.xpose.msra.mxu0 0.0
          %479 = vmatprep.mubr.f32.mxu0 0.0
          %480 = vmatmul.mubr.f32.gmra.mrb[0].mxu0 %v410
          %v481 = vpop.f32.mrb[0].mxu0
          %v482 = vadd.f32 0.0, %v481
          %v483 = vpop.f32.mrb[0].mxu0
          %484 = vdwg.mxu0
          %s485 = smul.u32 %s34, 8
          %v486 = vlaneseq
          %v487 = vshrl.u32 %v486, 7
          %v488 = vstv %s485
          %v489 = vadd.s32 %v488, %v487
          %v490 = vlaneseq
          %v491 = vand.u32 %v490, 127
          %v492 = vstv %s398
          %v493 = vadd.s32 %v492, %v491
          %vm494 = vcmp.lt.s32.totalorder %v489, %v493
          %v495 = vsel %vm494, -inf, %v482
          %v496 = vld [vmem:[#allocation2] sm:$0xff]
          %vm497 = vcmask 64512
          %v498 = vsel %vm497, %v495, -inf
          %499 = vmax.xlane.f32.xlu0 %v498
          %v500 = vpop.xlane.xlu0 %499
          %v501 = vmax.f32 %v496, %v500
          %v502 = vsub.f32 %v496, %v501
          %v503 = vmul.f32 %v502, 1.442695
          %v504 = vpow.pop %v503
          %506 = vset.pattern.permute.xlu0 0
          %507 = vperm.xlu0 %506, %v501
          %v508 = vpop.permute.xlu0 %507
          %v510 = vsub.f32 %v495, %v508
          %v511 = vmul.f32 %v510, 1.442695
          %v512 = vpow.pop %v511
          %v513 = vld [vmem:[#allocation3] sm:$0xff]
          %v514 = vmul.f32 %v504, %v513
          %v515 = vsel %vm497, %v512, 0.0
          %516 = vadd.xlane.f32.xlu0 %v515
          %v517 = vpop.xlane.xlu0 %516
          %v518 = vadd.f32 %v514, %v517
          %vm519 = vcmask 7168
          %520 = vst.msk [vmem:[#allocation3] sm:$0xff] %vm519, %v518
          %v521 = vld [vmem:[#allocation4] sm:$0xff]
          %523 = vset.pattern.permute.xlu0 0
          %524 = vperm.xlu0 %523, %v504
          %v525 = vpop.permute.xlu0 %524
          %v527 = vmul.f32 %v525, %v521
          %v529 = vsel %vm497, %v512, 0
          %531 = vmatprep.subr.mxu0 0.0
          %532 = vmatpush1.msra.mxu0 %v407
          %533 = vmatprep.subr.mxu0 0.0
          %534 = vmatpush1.msra.mxu0 0.0
          %535 = vmatprep.subr.mxu0 0.0
          %536 = vmatpush1.msra.mxu0 0.0
          %537 = vmatprep.subr.mxu0 0.0
          %538 = vmatpush1.msra.mxu0 0.0
          %539 = vmatprep.subr.mxu0 0.0
          %540 = vmatpush1.msra.mxu0 0.0
          %541 = vmatprep.subr.mxu0 0.0
          %542 = vmatpush1.msra.mxu0 0.0
          %543 = vmatprep.subr.mxu0 0.0
          %544 = vmatpush1.msra.mxu0 0.0
          %545 = vmatprep.subr.mxu0 0.0
          %546 = vmatpush1.msra.mxu0 0.0
          %547 = vmatprep.subr.mxu0 0.0
          %548 = vmatpush1.msra.mxu0 0.0
          %549 = vmatprep.subr.mxu0 0.0
          %550 = vmatpush1.msra.mxu0 0.0
          %551 = vmatprep.subr.mxu0 0.0
          %552 = vmatpush1.msra.mxu0 0.0
          %553 = vmatprep.subr.mxu0 0.0
          %554 = vmatpush1.msra.mxu0 0.0
          %555 = vmatprep.subr.mxu0 0.0
          %556 = vmatpush1.msra.mxu0 0.0
          %557 = vmatprep.subr.mxu0 0.0
          %558 = vmatpush1.msra.mxu0 0.0
          %559 = vmatprep.subr.mxu0 0.0
          %560 = vmatpush1.msra.mxu0 0.0
          %561 = vmatprep.subr.mxu0 0.0
          %562 = vmatpush1.msra.mxu0 0.0
          %563 = vmatprep.subr.mxu0 0.0
          %564 = vmatpush1.msra.mxu0 0.0
          %565 = vmatprep.subr.mxu0 0.0
          %566 = vmatpush1.msra.mxu0 0.0
          %567 = vmatprep.subr.mxu0 0.0
          %568 = vmatpush1.msra.mxu0 0.0
          %569 = vmatprep.subr.mxu0 0.0
          %570 = vmatpush1.msra.mxu0 0.0
          %571 = vmatprep.subr.mxu0 0.0
          %572 = vmatpush1.msra.mxu0 0.0
          %573 = vmatprep.subr.mxu0 0.0
          %574 = vmatpush1.msra.mxu0 0.0
          %575 = vmatprep.subr.mxu0 0.0
          %576 = vmatpush1.msra.mxu0 0.0
          %577 = vmatprep.subr.mxu0 0.0
          %578 = vmatpush1.msra.mxu0 0.0
          %579 = vmatprep.subr.mxu0 0.0
          %580 = vmatpush1.msra.mxu0 0.0
          %581 = vmatprep.subr.mxu0 0.0
          %582 = vmatpush1.msra.mxu0 0.0
          %583 = vmatprep.subr.mxu0 0.0
          %584 = vmatpush1.msra.mxu0 0.0
          %585 = vmatprep.subr.mxu0 0.0
          %586 = vmatpush1.msra.mxu0 0.0
          %587 = vmatprep.subr.mxu0 0.0
          %588 = vmatpush1.msra.mxu0 0.0
          %589 = vmatprep.subr.mxu0 0.0
          %590 = vmatpush1.msra.mxu0 0.0
          %591 = vmatprep.subr.mxu0 0.0
          %592 = vmatpush1.msra.mxu0 0.0
          %593 = vmatprep.subr.mxu0 0.0
          %594 = vmatpush1.msra.mxu0 0.0
          %595 = vmatprep.mubr.f32.mxu0 0.0
          %596 = vmatmul.mubr.f32.gmra.mrb[0].mxu0 %v529
          %v597 = vpop.f32.mrb[0].mxu0
          %v598 = vadd.f32 0.0, %v597
          %v599 = vpop.f32.mrb[0].mxu0
          %600 = vdwg.mxu0
          %v601 = vadd.f32 %v527, %v598
          %602 = vst.msk [vmem:[#allocation4] sm:$0xff] %vm408, %v601
          %603 = vst.msk [vmem:[#allocation2] sm:$0xff] %vm519, %v501
        $region60: #{tpu_custom_call.1} parent=35 // pred_fallthru
          _
        // Predicated region
        $region61: #{tpu_custom_call.1} parent=35 // pred_check
          %p604 = pneg %p389
        $region62: #{tpu_custom_call.1} parent=35 // pred_check_branch
          %606 = sbr.rel (%p604) target = $region64
        $region63: #{tpu_custom_call.1} parent=35 // pred_region
          %v607 = vld [vmem:[#allocation3] sm:$0xff]
          %v608 = vrcp.pop %v607
          %v609 = vmul.f32 %v607, %v608
          %v610 = vsub.f32 2.0, %v609
          %v611 = vmul.f32 %v608, %v610
          %v612 = vld [vmem:[#allocation4] sm:$0xff]
          %614 = vset.pattern.permute.xlu0 0
          %615 = vperm.xlu0 %614, %v611
          %v616 = vpop.permute.xlu0 %615
          %v618 = vmul.f32 %v612, %v616
          %v619 = vld [vmem:[%s345] sm:$0xff]
          %v620 = vld [vmem:[%s345 + $0x8] sm:$0xff]
          %vm621 = vcmask 130048
          %v623 = vsel %vm621, %v618, 0
          %625 = vmatprep.subr.mxu0 0.0
          %626 = vmatpush1.msra.mxu0 %v619
          %627 = vmatprep.subr.mxu0 0.0
          %628 = vmatpush1.msra.mxu0 %v620
          %629 = vmatprep.subr.mxu0 0.0
          %630 = vmatpush1.msra.mxu0 0.0
          %631 = vmatprep.subr.mxu0 0.0
          %632 = vmatpush1.msra.mxu0 0.0
          %633 = vmatprep.subr.mxu0 0.0
          %634 = vmatpush1.msra.mxu0 0.0
          %635 = vmatprep.subr.mxu0 0.0
          %636 = vmatpush1.msra.mxu0 0.0
          %637 = vmatprep.subr.mxu0 0.0
          %638 = vmatpush1.msra.mxu0 0.0
          %639 = vmatprep.subr.mxu0 0.0
          %640 = vmatpush1.msra.mxu0 0.0
          %641 = vmatprep.subr.mxu0 0.0
          %642 = vmatpush1.msra.mxu0 0.0
          %643 = vmatprep.subr.mxu0 0.0
          %644 = vmatpush1.msra.mxu0 0.0
          %645 = vmatprep.subr.mxu0 0.0
          %646 = vmatpush1.msra.mxu0 0.0
          %647 = vmatprep.subr.mxu0 0.0
          %648 = vmatpush1.msra.mxu0 0.0
          %649 = vmatprep.subr.mxu0 0.0
          %650 = vmatpush1.msra.mxu0 0.0
          %651 = vmatprep.subr.mxu0 0.0
          %652 = vmatpush1.msra.mxu0 0.0
          %653 = vmatprep.subr.mxu0 0.0
          %654 = vmatpush1.msra.mxu0 0.0
          %655 = vmatprep.subr.mxu0 0.0
          %656 = vmatpush1.msra.mxu0 0.0
          %657 = vmatprep.subr.mxu0 0.0
          %658 = vmatpush1.msra.mxu0 0.0
          %659 = vmatprep.subr.mxu0 0.0
          %660 = vmatpush1.msra.mxu0 0.0
          %661 = vmatprep.subr.mxu0 0.0
          %662 = vmatpush1.msra.mxu0 0.0
          %663 = vmatprep.subr.mxu0 0.0
          %664 = vmatpush1.msra.mxu0 0.0
          %665 = vmatprep.subr.mxu0 0.0
          %666 = vmatpush1.msra.mxu0 0.0
          %667 = vmatprep.subr.mxu0 0.0
          %668 = vmatpush1.msra.mxu0 0.0
          %669 = vmatprep.subr.mxu0 0.0
          %670 = vmatpush1.msra.mxu0 0.0
          %671 = vmatprep.subr.mxu0 0.0
          %672 = vmatpush1.msra.mxu0 0.0
          %673 = vmatprep.subr.mxu0 0.0
          %674 = vmatpush1.msra.mxu0 0.0
          %675 = vmatprep.subr.mxu0 0.0
          %676 = vmatpush1.msra.mxu0 0.0
          %677 = vmatprep.subr.mxu0 0.0
          %678 = vmatpush1.msra.mxu0 0.0
          %679 = vmatprep.subr.mxu0 0.0
          %680 = vmatpush1.msra.mxu0 0.0
          %681 = vmatprep.subr.mxu0 0.0
          %682 = vmatpush1.msra.mxu0 0.0
          %683 = vmatprep.subr.mxu0 0.0
          %684 = vmatpush1.msra.mxu0 0.0
          %685 = vmatprep.subr.mxu0 0.0
          %686 = vmatpush1.msra.mxu0 0.0
          %687 = vmatprep.subr.mxu0 0.0
          %688 = vmatpush1.msra.mxu0 0.0
          %689 = vmatprep.mubr.f32.mxu0 0.0
          %690 = vmatmul.mubr.f32.gmra.mrb[0].mxu0 %v623
          %v691 = vpop.f32.mrb[0].mxu0
          %v692 = vadd.f32 0.0, %v691
          %v693 = vpop.f32.mrb[0].mxu0
          %694 = vdwg.mxu0
          %p695 = scmp.eq.s32.totalorder %s35, 0
          // Predicated region
          $region65: #{tpu_custom_call.1} parent=63 // pred_check
            %p696 = pneg %p695
          $region66: #{tpu_custom_call.1} parent=63 // pred_check_branch
            %698 = sbr.rel (%p696) target = $region68
          $region67: #{tpu_custom_call.1} parent=63 // pred_region
            %vm699 = vcmask 261120
            %700 = vst.msk [vmem:[#allocation5] sm:$0xff] %vm699, %v692
          $region68: #{tpu_custom_call.1} parent=63 // pred_fallthru
            _
          %p701 = scmp.gt.s32.totalorder %s35, 0
          // Predicated region
          $region69: #{tpu_custom_call.1} parent=63 // pred_check
            %p702 = pneg %p701
          $region70: #{tpu_custom_call.1} parent=63 // pred_check_branch
            %704 = sbr.rel (%p702) target = $region72
          $region71: #{tpu_custom_call.1} parent=63 // pred_region
            %v705 = vld [vmem:[#allocation5] sm:$0xff]
            %v706 = vadd.f32 %v705, %v692
            %vm707 = vcmask 261120
            %708 = vst.msk [vmem:[#allocation5] sm:$0xff] %vm707, %v706
          $region72: #{tpu_custom_call.1} parent=63 // pred_fallthru
            _
          %p709 = scmp.eq.s32.totalorder %s35, 1
          // Predicated region
          $region73: #{tpu_custom_call.1} parent=63 // pred_check
            %p710 = pneg %p709
          $region74: #{tpu_custom_call.1} parent=63 // pred_check_branch
            %712 = sbr.rel (%p710) target = $region76
          $region75: #{tpu_custom_call.1} parent=63 // pred_region
            %v713 = vld [vmem:[#allocation5] sm:$0xff]
            %vm714 = vcmask 261120
            %715 = vst.msk [vmem:[%s384] sm:$0xff] %vm714, %v713
          $region76: #{tpu_custom_call.1} parent=63 // pred_fallthru
            _
        $region64: #{tpu_custom_call.1} parent=35 // pred_fallthru
          _
        %s716 = sand.u32 %s187, 1
        %s717 = scalar_lea.sflag [#allocation8], %s716
        %s718 = sand.u32 %s187, 1
        %s719 = smul.addr %s718, 8
        %s720 = scalar_lea.vmem [#allocation14], %s719
        // Predicated region
        $region77: #{tpu_custom_call.1} parent=35 // pred_check
          %p721 = pneg %p197
        $region78: #{tpu_custom_call.1} parent=35 // pred_check_branch
          %723 = sbr.rel (%p721) target = $region80
        $region79: #{tpu_custom_call.1} parent=35 // pred_region
          %s725 = ssub.s32 128, 128
          %726 = vsyncadd %s717, %s725
          %s727 = sadd.s32 %s34, %s33
          %s728 = smul.addr %s727, 128
          %s729 = scalar_lea.hbm %s4, %s728
          %s731 = sshll.u32 %s720, 4
          %s732 = int_to_ptr.vmem [resolvable:$true] %s731
          %734 = dma.vmem_to_hbm [thread:$0]  %s732, 128, %s729, %s717
        $region80: #{tpu_custom_call.1} parent=35 // pred_fallthru
          _
      $region36: #{tpu_custom_call.1} parent=5 // pred_fallthru
        _
      %p735 = scmp.le.s32.totalorder 2, %s22
      // Predicated region
      $region81: #{tpu_custom_call.1} parent=5 // pred_check
        %p736 = pneg %p735
      $region82: #{tpu_custom_call.1} parent=5 // pred_check_branch
        %738 = sbr.rel (%p736) target = $region84
      $region83: #{tpu_custom_call.1} parent=5 // pred_region
        %s739 = ssub.s32 %s22, 2
        // Predicated region
        $region85: #{tpu_custom_call.1} parent=83 // pred_check
          %p740 = pneg %p203
        $region86: #{tpu_custom_call.1} parent=83 // pred_check_branch
          %742 = sbr.rel (%p740) target = $region88
        $region87: #{tpu_custom_call.1} parent=83 // pred_region
          %s743 = sand.u32 %s188, 1
          %s744 = scalar_lea.sflag [#allocation8], %s743
          %s745 = sand.u32 %s188, 1
          %s746 = smul.addr %s745, 8
          %s747 = scalar_lea.vmem [#allocation14], %s746
          %748 = dma.done %s744, 128
        $region88: #{tpu_custom_call.1} parent=83 // pred_fallthru
          _
      $region84: #{tpu_custom_call.1} parent=5 // pred_fallthru
        _
    $region6: #{tpu_custom_call.1} parent=1 // loop_footer
      %s26 = sadd.s32 1, %s22
    $region7: #{tpu_custom_call.1} parent=1 // loop_footer_branch
      %21 = sbr.rel target = $region3
    $region8: #{tpu_custom_call.1} parent=1 // loop_exit
      _
    %749 = vsyncpa [#allocation7], 1
    %s750 = scalar_lea.sflag [#allocation7], 1
    %751 = vsyncpa %s750, 1
    %752 = vsyncpa [#allocation10], 1
    %s753 = scalar_lea.sflag [#allocation10], 1
    %754 = vsyncpa %s753, 1
    %755 = vsyncpa [#allocation13], 1
    %s756 = scalar_lea.sflag [#allocation13], 1
    %757 = vsyncpa %s756, 1
    %758 = vsyncpa [#allocation8], 1
    %s759 = scalar_lea.sflag [#allocation8], 1
    %760 = vsyncpa %s759, 1

</llo_original>
